<compile_context>
chip_gen: v7x
topology: tpu7x:2x2x1
jax: 0.10.0
libtpu: 0.0.40
codegen_flags: <defaults>
</compile_context>

<pallas_src>
import functools

import jax
import jax.numpy as jnp
from jax.experimental import pallas as pl
from jax.experimental.pallas import tpu as pltpu


def _round_up(x, m):
    return (x + m - 1) // m * m


def _conv1x1_pad1_kernel(x_ref, w_ref, b_ref, o_ref, xp_ref, *, H, W):
    """One grid step = Nb whole images.

    x_ref : (Nb, Cin, H*W)        raw (unpadded) input, position axis on lanes
    w_ref : (Cin, Cout, 1)        1x1 kernel, transposed so Cout sits on sublanes
    b_ref : (1, Cout, 1)          bias
    o_ref : (Nb, Cout, Pp)        padded output, Pp = (H+2)*(W+2) on lanes
    xp_ref: (Nb, Cin, Pp) f32     VMEM scratch = zero-padded input (built here)
    """
    Wp = W + 2
    Cin = x_ref.shape[1]

    # --- in-kernel zero padding -------------------------------------------
    # Zero every step (not just step 0): with "parallel" semantics the grid may
    # be sharded across TensorCores, so "program_id == 0" is not a safe guard.
    xp_ref[...] = jnp.zeros_like(xp_ref)
    # Place interior row h of the image at padded flat offset (h+1)*Wp + 1.
    # Static unrolled loop: H tiny VMEM->VMEM copies of width W (fine for the
    # module's 16/32-row images; a fori_loop / row-tiled grid would be used for
    # very large H).
    for h in range(H):
        dst = (h + 1) * Wp + 1
        xp_ref[:, :, dst:dst + W] = x_ref[:, :, h * W:(h + 1) * W].astype(jnp.float32)

    # --- degenerate-K "matmul" on the VPU ----------------------------------
    # y[b, o, p] = sum_c w[o, c] * x_pad[b, c, p] + bias[o]
    acc = None
    for c in range(Cin):
        xc = xp_ref[:, c:c + 1, :]                       # (Nb, 1, Pp)
        wc = w_ref[c][None].astype(jnp.float32)          # (1, Cout, 1)
        term = xc * wc                                   # (Nb, Cout, Pp)
        acc = term if acc is None else acc + term
    acc = acc + b_ref[...].astype(jnp.float32)           # border -> pure bias
    o_ref[...] = acc.astype(o_ref.dtype)


def _pick_batch_block(N, Cin, Cout, HW, Pp, itemsize):
    """Largest divisor-of-N batch block fitting a conservative VMEM budget,
    preferring >= 2 grid steps (v7x has 2 TensorCores)."""
    def step_bytes(nb):
        in_blk = nb * _round_up(Cin, 8) * _round_up(HW, 128) * itemsize
        out_blk = nb * _round_up(Cout, 8) * _round_up(Pp, 128) * itemsize
        scratch = nb * _round_up(Cin, 8) * _round_up(Pp, 128) * 4
        return 2 * (in_blk + out_blk) + scratch          # double-buffered in/out

    budget = 20 * 1024 * 1024                            # safe on v5e/v6e/v7x
    divisors = [d for d in range(1, N + 1) if N % d == 0]
    fitting = [d for d in divisors if step_bytes(d) <= budget] or [1]
    multi = [d for d in fitting if N // d >= 2]
    return max(multi) if multi else max(fitting)


def conv2d_1x1_pad1(x_nchw, weight, bias):
    """Equivalent of torch.nn.Conv2d(Cin, Cout, 1, stride=1, padding=1)(x).

    x_nchw: (N, Cin, H, W)
    weight: (Cout, Cin, 1, 1) or (Cout, Cin)
    bias:   (Cout,)
    returns (N, Cout, H+2, W+2) in NCHW.
    """
    N, Cin, H, W = x_nchw.shape
    Cout = bias.shape[0]
    Hp, Wp = H + 2, W + 2
    HW = H * W
    Pp = Hp * Wp
    itemsize = x_nchw.dtype.itemsize

    # Free reshapes only -- no extra HBM passes on the host side.
    x_flat = x_nchw.reshape(N, Cin, HW)
    w3 = weight.reshape(Cout, Cin).T.reshape(Cin, Cout, 1)   # 33 elements
    b3 = bias.reshape(1, Cout, 1)

    Nb = _pick_batch_block(N, Cin, Cout, HW, Pp, itemsize)
    grid = (N // Nb,)

    kernel = functools.partial(_conv1x1_pad1_kernel, H=H, W=W)

    flops = 2 * N * Cout * Cin * Pp
    bytes_accessed = (N * Cin * HW + N * Cout * Pp) * itemsize + (w3.size + b3.size) * 4

    out_flat = pl.pallas_call(
        kernel,
        out_shape=jax.ShapeDtypeStruct((N, Cout, Pp), x_nchw.dtype),
        grid_spec=pltpu.PrefetchScalarGridSpec(
            num_scalar_prefetch=0,
            grid=grid,
            in_specs=[
                pl.BlockSpec((Nb, Cin, HW), lambda i: (i, 0, 0)),
                pl.BlockSpec((Cin, Cout, 1), lambda i: (0, 0, 0)),
                pl.BlockSpec((1, Cout, 1), lambda i: (0, 0, 0)),
            ],
            out_specs=pl.BlockSpec((Nb, Cout, Pp), lambda i: (i, 0, 0)),
            scratch_shapes=[pltpu.VMEM((Nb, Cin, Pp), jnp.float32)],
        ),
        compiler_params=pltpu.CompilerParams(
            dimension_semantics=("parallel",),
            vmem_limit_bytes=32 * 1024 * 1024,
        ),
        cost_estimate=pl.CostEstimate(
            flops=flops, transcendentals=0, bytes_accessed=bytes_accessed),
    )(x_flat, w3, b3)

    # Free reshape back: (N, Cout, Pp) -> (N, Cout, Hp, Wp), already NCHW.
    return out_flat.reshape(N, Cout, Hp, Wp)


def reference(x_nchw, weight, bias):
    # pure-JAX reference: 1x1 conv with padding=1
    Cout = bias.shape[0]
    Cin = x_nchw.shape[1]
    w2 = weight.reshape(Cout, Cin)
    x_pad = jnp.pad(x_nchw, ((0, 0), (0, 0), (1, 1), (1, 1)))
    return jnp.einsum("nchw,oc->nohw", x_pad, w2) + bias[None, :, None, None]


if __name__ == "__main__":
    key = jax.random.PRNGKey(0)
    k_x, k_w, k_b = jax.random.split(key, 3)

    # small shapes consistent with the module (Cin=3, Cout=11 fixed by the conv)
    N, Cin, H, W = 2, 3, 16, 16
    Cout = 11

    x = jax.random.normal(k_x, (N, Cin, H, W), dtype=jnp.float32)

    # deterministic PyTorch-like init: uniform(-1/sqrt(fan_in), 1/sqrt(fan_in))
    fan_in = Cin * 1 * 1
    bound = 1.0 / (fan_in ** 0.5)
    weight = jax.random.uniform(k_w, (Cout, Cin, 1, 1), jnp.float32, -bound, bound)
    bias = jax.random.uniform(k_b, (Cout,), jnp.float32, -bound, bound)

    y = conv2d_1x1_pad1(x, weight, bias)
    y = jax.block_until_ready(y)

    y_ref = reference(x, weight, bias)
    assert y.shape == (N, Cout, H + 2, W + 2), y.shape
    assert jnp.allclose(y, y_ref, atol=1e-5, rtol=1e-5)

    print("KERNEL_OK")
</pallas_src>

<mosaic_0001>
module attributes {stable_mosaic.version = 11 : i64} {
  func.func @_conv1x1_pad1_kernel(%arg0: i32, %arg1: memref<1x3x256xf32, #tpu.memory_space<vmem>>, %arg2: memref<3x11x1xf32, #tpu.memory_space<vmem>>, %arg3: memref<1x11x1xf32, #tpu.memory_space<vmem>>, %arg4: memref<1x11x324xf32, #tpu.memory_space<vmem>>, %arg5: memref<1x3x324xf32, #tpu.memory_space<vmem>>) attributes {dimension_semantics = [#tpu.dimension_semantics<parallel>], iteration_bounds = array<i64: 2>, scalar_prefetch = 0 : i64, scratch_operands = 1 : i64, tpu.core_type = #tpu.core_type<tc>, window_params = [{transform_indices = @transform_0, window_bounds = array<i64: 1, 3, 256>}, {pipeline_mode = #tpu.pipeline_mode<synchronous>, transform_indices = @transform_1, window_bounds = array<i64: 3, 11, 1>}, {pipeline_mode = #tpu.pipeline_mode<synchronous>, transform_indices = @transform_2, window_bounds = array<i64: 1, 11, 1>}, {transform_indices = @transform_3, window_bounds = array<i64: 1, 11, 324>}]} {
    %cst = arith.constant 0.000000e+00 : f32
    %0 = vector.broadcast %cst : f32 to vector<1x3x324xf32>
    %c0 = arith.constant 0 : index
    %c0_0 = arith.constant 0 : index
    %c0_1 = arith.constant 0 : index
    %1 = vector.load %arg5[%c0, %c0_0, %c0_1] : memref<1x3x324xf32, #tpu.memory_space<vmem>>, vector<1x3x324xf32>
    tpu.vector_store %arg5[%c0, %c0_0, %c0_1], %0 {strides = array<i32>} : memref<1x3x324xf32, #tpu.memory_space<vmem>>, vector<1x3x324xf32>,
    %c0_2 = arith.constant 0 : index
    %c0_3 = arith.constant 0 : index
    %c0_4 = arith.constant 0 : index
    %2 = vector.load %arg1[%c0_2, %c0_3, %c0_4] : memref<1x3x256xf32, #tpu.memory_space<vmem>>, vector<1x3x16xf32>
    %c0_5 = arith.constant 0 : index
    %c0_6 = arith.constant 0 : index
    %c19 = arith.constant 19 : index
    %3 = vector.load %arg5[%c0_5, %c0_6, %c19] : memref<1x3x324xf32, #tpu.memory_space<vmem>>, vector<1x3x16xf32>
    tpu.vector_store %arg5[%c0_5, %c0_6, %c19], %2 {strides = array<i32>} : memref<1x3x324xf32, #tpu.memory_space<vmem>>, vector<1x3x16xf32>,
    %c0_7 = arith.constant 0 : index
    %c0_8 = arith.constant 0 : index
    %c16 = arith.constant 16 : index
    %4 = vector.load %arg1[%c0_7, %c0_8, %c16] : memref<1x3x256xf32, #tpu.memory_space<vmem>>, vector<1x3x16xf32>
    %c0_9 = arith.constant 0 : index
    %c0_10 = arith.constant 0 : index
    %c37 = arith.constant 37 : index
    %5 = vector.load %arg5[%c0_9, %c0_10, %c37] : memref<1x3x324xf32, #tpu.memory_space<vmem>>, vector<1x3x16xf32>
    tpu.vector_store %arg5[%c0_9, %c0_10, %c37], %4 {strides = array<i32>} : memref<1x3x324xf32, #tpu.memory_space<vmem>>, vector<1x3x16xf32>,
    %c0_11 = arith.constant 0 : index
    %c0_12 = arith.constant 0 : index
    %c32 = arith.constant 32 : index
    %6 = vector.load %arg1[%c0_11, %c0_12, %c32] : memref<1x3x256xf32, #tpu.memory_space<vmem>>, vector<1x3x16xf32>
    %c0_13 = arith.constant 0 : index
    %c0_14 = arith.constant 0 : index
    %c55 = arith.constant 55 : index
    %7 = vector.load %arg5[%c0_13, %c0_14, %c55] : memref<1x3x324xf32, #tpu.memory_space<vmem>>, vector<1x3x16xf32>
    tpu.vector_store %arg5[%c0_13, %c0_14, %c55], %6 {strides = array<i32>} : memref<1x3x324xf32, #tpu.memory_space<vmem>>, vector<1x3x16xf32>,
    %c0_15 = arith.constant 0 : index
    %c0_16 = arith.constant 0 : index
    %c48 = arith.constant 48 : index
    %8 = vector.load %arg1[%c0_15, %c0_16, %c48] : memref<1x3x256xf32, #tpu.memory_space<vmem>>, vector<1x3x16xf32>
    %c0_17 = arith.constant 0 : index
    %c0_18 = arith.constant 0 : index
    %c73 = arith.constant 73 : index
    %9 = vector.load %arg5[%c0_17, %c0_18, %c73] : memref<1x3x324xf32, #tpu.memory_space<vmem>>, vector<1x3x16xf32>
    tpu.vector_store %arg5[%c0_17, %c0_18, %c73], %8 {strides = array<i32>} : memref<1x3x324xf32, #tpu.memory_space<vmem>>, vector<1x3x16xf32>,
    %c0_19 = arith.constant 0 : index
    %c0_20 = arith.constant 0 : index
    %c64 = arith.constant 64 : index
    %10 = vector.load %arg1[%c0_19, %c0_20, %c64] : memref<1x3x256xf32, #tpu.memory_space<vmem>>, vector<1x3x16xf32>
    %c0_21 = arith.constant 0 : index
    %c0_22 = arith.constant 0 : index
    %c91 = arith.constant 91 : index
    %11 = vector.load %arg5[%c0_21, %c0_22, %c91] : memref<1x3x324xf32, #tpu.memory_space<vmem>>, vector<1x3x16xf32>
    tpu.vector_store %arg5[%c0_21, %c0_22, %c91], %10 {strides = array<i32>} : memref<1x3x324xf32, #tpu.memory_space<vmem>>, vector<1x3x16xf32>,
    %c0_23 = arith.constant 0 : index
    %c0_24 = arith.constant 0 : index
    %c80 = arith.constant 80 : index
    %12 = vector.load %arg1[%c0_23, %c0_24, %c80] : memref<1x3x256xf32, #tpu.memory_space<vmem>>, vector<1x3x16xf32>
    %c0_25 = arith.constant 0 : index
    %c0_26 = arith.constant 0 : index
    %c109 = arith.constant 109 : index
    %13 = vector.load %arg5[%c0_25, %c0_26, %c109] : memref<1x3x324xf32, #tpu.memory_space<vmem>>, vector<1x3x16xf32>
    tpu.vector_store %arg5[%c0_25, %c0_26, %c109], %12 {strides = array<i32>} : memref<1x3x324xf32, #tpu.memory_space<vmem>>, vector<1x3x16xf32>,
    %c0_27 = arith.constant 0 : index
    %c0_28 = arith.constant 0 : index
    %c96 = arith.constant 96 : index
    %14 = vector.load %arg1[%c0_27, %c0_28, %c96] : memref<1x3x256xf32, #tpu.memory_space<vmem>>, vector<1x3x16xf32>
    %c0_29 = arith.constant 0 : index
    %c0_30 = arith.constant 0 : index
    %c127 = arith.constant 127 : index
    %15 = vector.load %arg5[%c0_29, %c0_30, %c127] : memref<1x3x324xf32, #tpu.memory_space<vmem>>, vector<1x3x16xf32>
    tpu.vector_store %arg5[%c0_29, %c0_30, %c127], %14 {strides = array<i32>} : memref<1x3x324xf32, #tpu.memory_space<vmem>>, vector<1x3x16xf32>,
    %c0_31 = arith.constant 0 : index
    %c0_32 = arith.constant 0 : index
    %c112 = arith.constant 112 : index
    %16 = vector.load %arg1[%c0_31, %c0_32, %c112] : memref<1x3x256xf32, #tpu.memory_space<vmem>>, vector<1x3x16xf32>
    %c0_33 = arith.constant 0 : index
    %c0_34 = arith.constant 0 : index
    %c145 = arith.constant 145 : index
    %17 = vector.load %arg5[%c0_33, %c0_34, %c145] : memref<1x3x324xf32, #tpu.memory_space<vmem>>, vector<1x3x16xf32>
    tpu.vector_store %arg5[%c0_33, %c0_34, %c145], %16 {strides = array<i32>} : memref<1x3x324xf32, #tpu.memory_space<vmem>>, vector<1x3x16xf32>,
    %c0_35 = arith.constant 0 : index
    %c0_36 = arith.constant 0 : index
    %c128 = arith.constant 128 : index
    %18 = vector.load %arg1[%c0_35, %c0_36, %c128] : memref<1x3x256xf32, #tpu.memory_space<vmem>>, vector<1x3x16xf32>
    %c0_37 = arith.constant 0 : index
    %c0_38 = arith.constant 0 : index
    %c163 = arith.constant 163 : index
    %19 = vector.load %arg5[%c0_37, %c0_38, %c163] : memref<1x3x324xf32, #tpu.memory_space<vmem>>, vector<1x3x16xf32>
    tpu.vector_store %arg5[%c0_37, %c0_38, %c163], %18 {strides = array<i32>} : memref<1x3x324xf32, #tpu.memory_space<vmem>>, vector<1x3x16xf32>,
    %c0_39 = arith.constant 0 : index
    %c0_40 = arith.constant 0 : index
    %c144 = arith.constant 144 : index
    %20 = vector.load %arg1[%c0_39, %c0_40, %c144] : memref<1x3x256xf32, #tpu.memory_space<vmem>>, vector<1x3x16xf32>
    %c0_41 = arith.constant 0 : index
    %c0_42 = arith.constant 0 : index
    %c181 = arith.constant 181 : index
    %21 = vector.load %arg5[%c0_41, %c0_42, %c181] : memref<1x3x324xf32, #tpu.memory_space<vmem>>, vector<1x3x16xf32>
    tpu.vector_store %arg5[%c0_41, %c0_42, %c181], %20 {strides = array<i32>} : memref<1x3x324xf32, #tpu.memory_space<vmem>>, vector<1x3x16xf32>,
    %c0_43 = arith.constant 0 : index
    %c0_44 = arith.constant 0 : index
    %c160 = arith.constant 160 : index
    %22 = vector.load %arg1[%c0_43, %c0_44, %c160] : memref<1x3x256xf32, #tpu.memory_space<vmem>>, vector<1x3x16xf32>
    %c0_45 = arith.constant 0 : index
    %c0_46 = arith.constant 0 : index
    %c199 = arith.constant 199 : index
    %23 = vector.load %arg5[%c0_45, %c0_46, %c199] : memref<1x3x324xf32, #tpu.memory_space<vmem>>, vector<1x3x16xf32>
    tpu.vector_store %arg5[%c0_45, %c0_46, %c199], %22 {strides = array<i32>} : memref<1x3x324xf32, #tpu.memory_space<vmem>>, vector<1x3x16xf32>,
    %c0_47 = arith.constant 0 : index
    %c0_48 = arith.constant 0 : index
    %c176 = arith.constant 176 : index
    %24 = vector.load %arg1[%c0_47, %c0_48, %c176] : memref<1x3x256xf32, #tpu.memory_space<vmem>>, vector<1x3x16xf32>
    %c0_49 = arith.constant 0 : index
    %c0_50 = arith.constant 0 : index
    %c217 = arith.constant 217 : index
    %25 = vector.load %arg5[%c0_49, %c0_50, %c217] : memref<1x3x324xf32, #tpu.memory_space<vmem>>, vector<1x3x16xf32>
    tpu.vector_store %arg5[%c0_49, %c0_50, %c217], %24 {strides = array<i32>} : memref<1x3x324xf32, #tpu.memory_space<vmem>>, vector<1x3x16xf32>,
    %c0_51 = arith.constant 0 : index
    %c0_52 = arith.constant 0 : index
    %c192 = arith.constant 192 : index
    %26 = vector.load %arg1[%c0_51, %c0_52, %c192] : memref<1x3x256xf32, #tpu.memory_space<vmem>>, vector<1x3x16xf32>
    %c0_53 = arith.constant 0 : index
    %c0_54 = arith.constant 0 : index
    %c235 = arith.constant 235 : index
    %27 = vector.load %arg5[%c0_53, %c0_54, %c235] : memref<1x3x324xf32, #tpu.memory_space<vmem>>, vector<1x3x16xf32>
    tpu.vector_store %arg5[%c0_53, %c0_54, %c235], %26 {strides = array<i32>} : memref<1x3x324xf32, #tpu.memory_space<vmem>>, vector<1x3x16xf32>,
    %c0_55 = arith.constant 0 : index
    %c0_56 = arith.constant 0 : index
    %c208 = arith.constant 208 : index
    %28 = vector.load %arg1[%c0_55, %c0_56, %c208] : memref<1x3x256xf32, #tpu.memory_space<vmem>>, vector<1x3x16xf32>
    %c0_57 = arith.constant 0 : index
    %c0_58 = arith.constant 0 : index
    %c253 = arith.constant 253 : index
    %29 = vector.load %arg5[%c0_57, %c0_58, %c253] : memref<1x3x324xf32, #tpu.memory_space<vmem>>, vector<1x3x16xf32>
    tpu.vector_store %arg5[%c0_57, %c0_58, %c253], %28 {strides = array<i32>} : memref<1x3x324xf32, #tpu.memory_space<vmem>>, vector<1x3x16xf32>,
    %c0_59 = arith.constant 0 : index
    %c0_60 = arith.constant 0 : index
    %c224 = arith.constant 224 : index
    %30 = vector.load %arg1[%c0_59, %c0_60, %c224] : memref<1x3x256xf32, #tpu.memory_space<vmem>>, vector<1x3x16xf32>
    %c0_61 = arith.constant 0 : index
    %c0_62 = arith.constant 0 : index
    %c271 = arith.constant 271 : index
    %31 = vector.load %arg5[%c0_61, %c0_62, %c271] : memref<1x3x324xf32, #tpu.memory_space<vmem>>, vector<1x3x16xf32>
    tpu.vector_store %arg5[%c0_61, %c0_62, %c271], %30 {strides = array<i32>} : memref<1x3x324xf32, #tpu.memory_space<vmem>>, vector<1x3x16xf32>,
    %c0_63 = arith.constant 0 : index
    %c0_64 = arith.constant 0 : index
    %c240 = arith.constant 240 : index
    %32 = vector.load %arg1[%c0_63, %c0_64, %c240] : memref<1x3x256xf32, #tpu.memory_space<vmem>>, vector<1x3x16xf32>
    %c0_65 = arith.constant 0 : index
    %c0_66 = arith.constant 0 : index
    %c289 = arith.constant 289 : index
    %33 = vector.load %arg5[%c0_65, %c0_66, %c289] : memref<1x3x324xf32, #tpu.memory_space<vmem>>, vector<1x3x16xf32>
    tpu.vector_store %arg5[%c0_65, %c0_66, %c289], %32 {strides = array<i32>} : memref<1x3x324xf32, #tpu.memory_space<vmem>>, vector<1x3x16xf32>,
    %c0_67 = arith.constant 0 : index
    %c0_68 = arith.constant 0 : index
    %c0_69 = arith.constant 0 : index
    %34 = vector.load %arg5[%c0_67, %c0_68, %c0_69] : memref<1x3x324xf32, #tpu.memory_space<vmem>>, vector<1x1x324xf32>
    %c0_70 = arith.constant 0 : index
    %c0_71 = arith.constant 0 : index
    %c0_72 = arith.constant 0 : index
    %35 = vector.load %arg2[%c0_70, %c0_71, %c0_72] : memref<3x11x1xf32, #tpu.memory_space<vmem>>, vector<1x11x1xf32>
    %36 = vector.shape_cast %35 : vector<1x11x1xf32> to vector<11x1xf32>
    %37 = vector.shape_cast %36 : vector<11x1xf32> to vector<1x11x1xf32>
    %38 = vector.broadcast %34 : vector<1x1x324xf32> to vector<1x11x324xf32>
    %39 = vector.broadcast %37 : vector<1x11x1xf32> to vector<1x11x324xf32>
    %40 = arith.mulf %38, %39 : vector<1x11x324xf32>
    %c0_73 = arith.constant 0 : index
    %c1 = arith.constant 1 : index
    %c0_74 = arith.constant 0 : index
    %41 = vector.load %arg5[%c0_73, %c1, %c0_74] : memref<1x3x324xf32, #tpu.memory_space<vmem>>, vector<1x1x324xf32>
    %c1_75 = arith.constant 1 : index
    %c0_76 = arith.constant 0 : index
    %c0_77 = arith.constant 0 : index
    %42 = vector.load %arg2[%c1_75, %c0_76, %c0_77] : memref<3x11x1xf32, #tpu.memory_space<vmem>>, vector<1x11x1xf32>
    %43 = vector.shape_cast %42 : vector<1x11x1xf32> to vector<11x1xf32>
    %44 = vector.shape_cast %43 : vector<11x1xf32> to vector<1x11x1xf32>
    %45 = vector.broadcast %41 : vector<1x1x324xf32> to vector<1x11x324xf32>
    %46 = vector.broadcast %44 : vector<1x11x1xf32> to vector<1x11x324xf32>
    %47 = arith.mulf %45, %46 : vector<1x11x324xf32>
    %48 = arith.addf %40, %47 : vector<1x11x324xf32>
    %c0_78 = arith.constant 0 : index
    %c2 = arith.constant 2 : index
    %c0_79 = arith.constant 0 : index
    %49 = vector.load %arg5[%c0_78, %c2, %c0_79] : memref<1x3x324xf32, #tpu.memory_space<vmem>>, vector<1x1x324xf32>
    %c2_80 = arith.constant 2 : index
    %c0_81 = arith.constant 0 : index
    %c0_82 = arith.constant 0 : index
    %50 = vector.load %arg2[%c2_80, %c0_81, %c0_82] : memref<3x11x1xf32, #tpu.memory_space<vmem>>, vector<1x11x1xf32>
    %51 = vector.shape_cast %50 : vector<1x11x1xf32> to vector<11x1xf32>
    %52 = vector.shape_cast %51 : vector<11x1xf32> to vector<1x11x1xf32>
    %53 = vector.broadcast %49 : vector<1x1x324xf32> to vector<1x11x324xf32>
    %54 = vector.broadcast %52 : vector<1x11x1xf32> to vector<1x11x324xf32>
    %55 = arith.mulf %53, %54 : vector<1x11x324xf32>
    %56 = arith.addf %48, %55 : vector<1x11x324xf32>
    %c0_83 = arith.constant 0 : index
    %c0_84 = arith.constant 0 : index
    %c0_85 = arith.constant 0 : index
    %57 = vector.load %arg3[%c0_83, %c0_84, %c0_85] : memref<1x11x1xf32, #tpu.memory_space<vmem>>, vector<1x11x1xf32>
    %58 = vector.broadcast %57 : vector<1x11x1xf32> to vector<1x11x324xf32>
    %59 = arith.addf %56, %58 : vector<1x11x324xf32>
    %c0_86 = arith.constant 0 : index
    %c0_87 = arith.constant 0 : index
    %c0_88 = arith.constant 0 : index
    %60 = vector.load %arg4[%c0_86, %c0_87, %c0_88] : memref<1x11x324xf32, #tpu.memory_space<vmem>>, vector<1x11x324xf32>
    tpu.vector_store %arg4[%c0_86, %c0_87, %c0_88], %59 {strides = array<i32>} : memref<1x11x324xf32, #tpu.memory_space<vmem>>, vector<1x11x324xf32>,
    return
  }
  func.func @transform_0(%arg0: i32) -> (i32, i32, i32) {
    %c0_i32 = arith.constant 0 : i32
    %c0_i32_0 = arith.constant 0 : i32
    %c0_i32_1 = arith.constant 0 : i32
    return %arg0, %c0_i32, %c0_i32_0 : i32, i32, i32
  }
  func.func @transform_1(%arg0: i32) -> (i32, i32, i32) {
    %c0_i32 = arith.constant 0 : i32
    %c0_i32_0 = arith.constant 0 : i32
    %c0_i32_1 = arith.constant 0 : i32
    %c0_i32_2 = arith.constant 0 : i32
    return %c0_i32, %c0_i32_0, %c0_i32_1 : i32, i32, i32
  }
  func.func @transform_2(%arg0: i32) -> (i32, i32, i32) {
    %c0_i32 = arith.constant 0 : i32
    %c0_i32_0 = arith.constant 0 : i32
    %c0_i32_1 = arith.constant 0 : i32
    %c0_i32_2 = arith.constant 0 : i32
    return %c0_i32, %c0_i32_0, %c0_i32_1 : i32, i32, i32
  }
  func.func @transform_3(%arg0: i32) -> (i32, i32, i32) {
    %c0_i32 = arith.constant 0 : i32
    %c0_i32_0 = arith.constant 0 : i32
    %c0_i32_1 = arith.constant 0 : i32
    return %arg0, %c0_i32, %c0_i32_0 : i32, i32, i32
  }
}

</mosaic_0001>

<llo_original>
// kernel: tpu_custom_call.1
$region0: #{tpu_custom_call.1}
  #allocation0 [shape = 'u32[]', space=smem, size = 0x4, offset = 0x4, fixed_abs, tag = 'smem constant byte address 0x4 - core index']
  #allocation1 [shape = 'u32[144,128]{1,0:T(1,128)}', space=vmem, size = 0x12000, scoped, tag = 'internal scratch']
  #allocation2 [shape = 'f32[1,3,324]{2,1,0:T(4,128)}', space=vmem, size = 0x1800, scoped, tag = 'scratch operand']
  %s0 = inlined_call_operand.vmem [shape: f32[2,3,256], index: 0, kind: input, shape index: {}]
  %s1 = inlined_call_operand.vmem [shape: f32[3,11,1], index: 1, kind: input, shape index: {}]
  %s2 = inlined_call_operand.vmem [shape: f32[1,11,1], index: 2, kind: input, shape index: {}]
  %s3 = inlined_call_operand.vmem [shape: f32[2,11,324], index: 3, kind: output, shape index: {}]
  %s4 = sld [smem:[#allocation0]]
  $region45: #{tpu_custom_call.1} parent=0
    _
  %s6 = ssub.s32 1, %s4
  %s7 = scalar_select 0, %s6, %s4
  loop: start=0, step=1, limit=4
  $region2: #{tpu_custom_call.1} parent=0 // loop_pre_header
    _
  $region3: #{tpu_custom_call.1} parent=0 // loop_header
    %s9 = sphi 0, %s13
    %p10 = scmp.ge.s32.totalorder %s9, 4
    %s19 = sphi 0, %s21
    %s22 = sphi 0, %s19
    %s23 = sphi 0, %s22
    %s39 = sphi 0, %s23
    %s43 = sphi 0, %s43
    %s45 = sphi 0, %s43
    %s46 = sphi 0, %s45
    %s60 = sphi 0, %s46
    %s64 = sphi 0, %s64
    %s66 = sphi 0, %s64
    %s67 = sphi 0, %s66
    %s81 = sphi 0, %s67
    %s87 = sphi 0, %s89
    %s90 = sphi 0, %s87
    %s91 = sphi 0, %s90
    %s107 = sphi 0, %s91
  $region4: #{tpu_custom_call.1} parent=0 // loop_header_branch
    %12 = sbr.rel (%p10) target = $region8
  $region5: #{tpu_custom_call.1} parent=0 // loop_body
    %s14 = ssub.s32 %s9, 1
    %s15 = ssub.s32 %s9, 2
    %s16 = sadd.s32 %s9, 1
    %s17 = ssub.s32 %s9, %s16
    %p18 = scmp.eq.s32.totalorder %s17, 0
    %s20 = sadd.s32 %s19, 1
    %s21 = scalar_select %p18, %s19, %s20
    %p24 = pneg %p18
    %p25 = scmp.eq.s32.totalorder %s9, 1
    %p26 = por %p24, %p25
    %p27 = scmp.ne.s32.totalorder %s19, %s22
    %p28 = scmp.eq.s32.totalorder %s9, 0
    %p29 = por %p27, %p28
    %p30 = scmp.ne.s32.totalorder %s19, %s22
    %p31 = scmp.eq.s32.totalorder %s14, 1
    %p32 = por %p30, %p31
    %p33 = scmp.ne.s32.totalorder %s22, %s23
    %p34 = scmp.eq.s32.totalorder %s14, 0
    %p35 = por %p33, %p34
    %p36 = scmp.ne.s32.totalorder %s22, %s23
    %p37 = scmp.eq.s32.totalorder %s15, 1
    %p38 = por %p36, %p37
    %p40 = scmp.ne.s32.totalorder %s23, %s39
    %p41 = scmp.eq.s32.totalorder %s15, 0
    %p42 = por %p40, %p41
    %s44 = sadd.s32 %s43, 1
    %p47 = scmp.eq.s32.totalorder %s9, 1
    %p48 = scmp.ne.s32.totalorder %s43, %s45
    %p49 = scmp.eq.s32.totalorder %s9, 0
    %p50 = por %p48, %p49
    %p51 = scmp.ne.s32.totalorder %s43, %s45
    %p52 = scmp.eq.s32.totalorder %s14, 1
    %p53 = por %p51, %p52
    %p54 = scmp.ne.s32.totalorder %s45, %s46
    %p55 = scmp.eq.s32.totalorder %s14, 0
    %p56 = por %p54, %p55
    %p57 = scmp.ne.s32.totalorder %s45, %s46
    %p58 = scmp.eq.s32.totalorder %s15, 1
    %p59 = por %p57, %p58
    %p61 = scmp.ne.s32.totalorder %s46, %s60
    %p62 = scmp.eq.s32.totalorder %s15, 0
    %p63 = por %p61, %p62
    %s65 = sadd.s32 %s64, 1
    %p68 = scmp.eq.s32.totalorder %s9, 1
    %p69 = scmp.ne.s32.totalorder %s64, %s66
    %p70 = scmp.eq.s32.totalorder %s9, 0
    %p71 = por %p69, %p70
    %p72 = scmp.ne.s32.totalorder %s64, %s66
    %p73 = scmp.eq.s32.totalorder %s14, 1
    %p74 = por %p72, %p73
    %p75 = scmp.ne.s32.totalorder %s66, %s67
    %p76 = scmp.eq.s32.totalorder %s14, 0
    %p77 = por %p75, %p76
    %p78 = scmp.ne.s32.totalorder %s66, %s67
    %p79 = scmp.eq.s32.totalorder %s15, 1
    %p80 = por %p78, %p79
    %p82 = scmp.ne.s32.totalorder %s67, %s81
    %p83 = scmp.eq.s32.totalorder %s15, 0
    %p84 = por %p82, %p83
    %s85 = ssub.s32 %s9, %s16
    %p86 = scmp.eq.s32.totalorder %s85, 0
    %s88 = sadd.s32 %s87, 1
    %s89 = scalar_select %p86, %s87, %s88
    %p92 = pneg %p86
    %p93 = scmp.eq.s32.totalorder %s9, 1
    %p94 = por %p92, %p93
    %p95 = scmp.ne.s32.totalorder %s87, %s90
    %p96 = scmp.eq.s32.totalorder %s9, 0
    %p97 = por %p95, %p96
    %p98 = scmp.ne.s32.totalorder %s87, %s90
    %p99 = scmp.eq.s32.totalorder %s14, 1
    %p100 = por %p98, %p99
    %p101 = scmp.ne.s32.totalorder %s90, %s91
    %p102 = scmp.eq.s32.totalorder %s14, 0
    %p103 = por %p101, %p102
    %p104 = scmp.ne.s32.totalorder %s90, %s91
    %p105 = scmp.eq.s32.totalorder %s15, 1
    %p106 = por %p104, %p105
    %p108 = scmp.ne.s32.totalorder %s91, %s107
    %p109 = scmp.eq.s32.totalorder %s15, 0
    %p110 = por %p108, %p109
    %p111 = scmp.le.s32.totalorder 1, %s9
    %p112 = scmp.lt.s32.totalorder %s9, 3
    %p113 = pnand %p111, %p112
    %p114 = pneg %p113
    // Predicated region
    $region9: #{tpu_custom_call.1} parent=5 // pred_check
      _
    $region10: #{tpu_custom_call.1} parent=5 // pred_check_branch
      %116 = sbr.rel (%p113) target = $region12
    $region11: #{tpu_custom_call.1} parent=5 // pred_region
      %s117 = ssub.s32 %s9, 1
      // Predicated region
      $region13: #{tpu_custom_call.1} parent=11 // pred_check
        %p118 = pneg %p56
      $region14: #{tpu_custom_call.1} parent=11 // pred_check_branch
        %120 = sbr.rel (%p118) target = $region16
      $region15: #{tpu_custom_call.1} parent=11 // pred_region
        _
      $region16: #{tpu_custom_call.1} parent=11 // pred_fallthru
        _
      // Predicated region
      $region17: #{tpu_custom_call.1} parent=11 // pred_check
        %p121 = pneg %p77
      $region18: #{tpu_custom_call.1} parent=11 // pred_check_branch
        %123 = sbr.rel (%p121) target = $region20
      $region19: #{tpu_custom_call.1} parent=11 // pred_region
        _
      $region20: #{tpu_custom_call.1} parent=11 // pred_fallthru
        _
    $region12: #{tpu_custom_call.1} parent=5 // pred_fallthru
      _
    %p124 = scmp.lt.s32.totalorder %s9, 2
    // Predicated region
    $region21: #{tpu_custom_call.1} parent=5 // pred_check
      %p125 = pneg %p124
    $region22: #{tpu_custom_call.1} parent=5 // pred_check_branch
      %127 = sbr.rel (%p125) target = $region24
    $region23: #{tpu_custom_call.1} parent=5 // pred_region
      // Predicated region
      $region25: #{tpu_custom_call.1} parent=23 // pred_check
        %p128 = pneg %p29
      $region26: #{tpu_custom_call.1} parent=23 // pred_check_branch
        %130 = sbr.rel (%p128) target = $region28
      $region27: #{tpu_custom_call.1} parent=23 // pred_region
        %p131 = scmp.lt.s32.totalorder %s9, 1
        %s132 = scalar_select %p131, %s9, 1
        %s133 = smul.addr %s132, 2
        %s134 = smul.addr %s133, 4
        %s135 = scalar_lea.vmem %s0, %s134
      $region28: #{tpu_custom_call.1} parent=23 // pred_fallthru
        _
    $region24: #{tpu_custom_call.1} parent=5 // pred_fallthru
      _
    %p136 = scmp.le.s32.totalorder 1, %s9
    %p137 = scmp.lt.s32.totalorder %s9, 3
    %p138 = pnand %p136, %p137
    %p139 = pneg %p138
    // Predicated region
    $region29: #{tpu_custom_call.1} parent=5 // pred_check
      _
    $region30: #{tpu_custom_call.1} parent=5 // pred_check_branch
      %141 = sbr.rel (%p138) target = $region32
    $region31: #{tpu_custom_call.1} parent=5 // pred_region
      %s142 = ssub.s32 %s9, 1
      %p143 = scmp.lt.s32.totalorder %s14, 1
      %s144 = scalar_select %p143, %s14, 1
      %s145 = smul.addr %s144, 2
      %s146 = smul.addr %s145, 4
      %s147 = scalar_lea.vmem %s0, %s146
      %p148 = pneg %p35
      %p149 = pneg %p32
      %p150 = pneg %p56
      %p151 = pneg %p53
      %p152 = pneg %p77
      %p153 = pneg %p74
      %p154 = pneg %p103
      %p155 = pneg %p100
      %p156 = scmp.lt.s32.totalorder %s14, 1
      %s157 = scalar_select %p156, %s14, 1
      %s158 = smul.addr %s157, 6
      %s159 = smul.addr %s158, 8
      %s160 = scalar_lea.vmem %s3, %s159
      %p161 = scmp.lt.s32.totalorder %s14, 1
      %s162 = scalar_select %p161, %s14, 1
      %s163 = smul.addr %s162, 2
      %s164 = smul.addr %s163, 4
      %s165 = scalar_lea.vmem %s0, %s164
      %p166 = scmp.lt.s32.totalorder %s14, 1
      %s167 = scalar_select %p166, %s14, 1
      %s168 = smul.addr %s167, 6
      %s169 = smul.addr %s168, 8
      %s170 = scalar_lea.vmem %s3, %s169
      %171 = vst [vmem:[#allocation2] sm:$0x77] 0.0
      %vm172 = vcmask 550912
      %173 = vst.msk [vmem:[#allocation2 + $0x8] sm:$0x7] %vm172, 0.0
      %v174 = vld [vmem:[%s165] sm:$0x7]
      %176 = vrot.lane.b32.xlu0 %v174, 19
      %v177 = vpop.permute.xlu0 %176
      %vm179 = vcmask 280728
      %180 = vst.msk [vmem:[#allocation2] sm:$0x7] %vm179, %v177
      %v181 = vld [vmem:[%s165] sm:$0x7]
      %183 = vrot.lane.b32.xlu0 %v181, 21
      %v184 = vpop.permute.xlu0 %183
      %vm186 = vcmask 428328
      %187 = vst.msk [vmem:[#allocation2] sm:$0x7] %vm186, %v184
      %v188 = vld [vmem:[%s165] sm:$0x7]
      %190 = vrot.lane.b32.xlu0 %v188, 23
      %v191 = vpop.permute.xlu0 %190
      %vm193 = vcmask 575928
      %194 = vst.msk [vmem:[#allocation2] sm:$0x7] %vm193, %v191
      %v195 = vld [vmem:[%s165] sm:$0x7]
      %197 = vrot.lane.b32.xlu0 %v195, 25
      %v198 = vpop.permute.xlu0 %197
      %vm200 = vcmask 723528
      %201 = vst.msk [vmem:[#allocation2] sm:$0x7] %vm200, %v198
      %v202 = vld [vmem:[%s165] sm:$0x7]
      %204 = vrot.lane.b32.xlu0 %v202, 27
      %v205 = vpop.permute.xlu0 %204
      %vm207 = vcmask 871128
      %208 = vst.msk [vmem:[#allocation2] sm:$0x7] %vm207, %v205
      %v209 = vld [vmem:[%s165] sm:$0x7]
      %211 = vrot.lane.b32.xlu0 %v209, 29
      %v212 = vpop.permute.xlu0 %211
      %vm214 = vcmask 1018728
      %215 = vst.msk [vmem:[#allocation2] sm:$0x7] %vm214, %v212
      %v216 = vld [vmem:[%s165] sm:$0x7]
      %218 = vrot.lane.b32.xlu0 %v216, 31
      %v219 = vpop.permute.xlu0 %218
      %v220 = vrot.slane %v219, 4
      %vm221 = vcmask 252928
      %v222 = vsel %vm221, %v220, %v219
      %vm224 = vcmask 1043448
      %vm225 = vcmask 120836
      %vm226 = vmor %vm225, %vm224
      %227 = vst.msk [vmem:[#allocation2] sm:$0x77] %vm226, %v222
      %v228 = vld [vmem:[%s165] sm:$0x7]
      %230 = vrot.lane.b32.xlu0 %v228, 33
      %v231 = vpop.permute.xlu0 %230
      %vm233 = vcmask 264328
      %234 = vst.msk [vmem:[#allocation2 + $0x4] sm:$0x7] %vm233, %v231
      %v235 = vld [vmem:[%s165 + $0x4] sm:$0x7]
      %237 = vrot.lane.b32.xlu0 %v235, 35
      %v238 = vpop.permute.xlu0 %237
      %vm240 = vcmask 411928
      %241 = vst.msk [vmem:[#allocation2 + $0x4] sm:$0x7] %vm240, %v238
      %v242 = vld [vmem:[%s165 + $0x4] sm:$0x7]
      %244 = vrot.lane.b32.xlu0 %v242, 37
      %v245 = vpop.permute.xlu0 %244
      %vm247 = vcmask 559528
      %248 = vst.msk [vmem:[#allocation2 + $0x4] sm:$0x7] %vm247, %v245
      %v249 = vld [vmem:[%s165 + $0x4] sm:$0x7]
      %251 = vrot.lane.b32.xlu0 %v249, 39
      %v252 = vpop.permute.xlu0 %251
      %vm254 = vcmask 707128
      %255 = vst.msk [vmem:[#allocation2 + $0x4] sm:$0x7] %vm254, %v252
      %v256 = vld [vmem:[%s165 + $0x4] sm:$0x7]
      %258 = vrot.lane.b32.xlu0 %v256, 41
      %v259 = vpop.permute.xlu0 %258
      %vm261 = vcmask 854728
      %262 = vst.msk [vmem:[#allocation2 + $0x4] sm:$0x7] %vm261, %v259
      %v263 = vld [vmem:[%s165 + $0x4] sm:$0x7]
      %265 = vrot.lane.b32.xlu0 %v263, 43
      %v266 = vpop.permute.xlu0 %265
      %vm268 = vcmask 1002328
      %269 = vst.msk [vmem:[#allocation2 + $0x4] sm:$0x7] %vm268, %v266
      %v270 = vld [vmem:[%s165 + $0x4] sm:$0x7]
      %272 = vrot.lane.b32.xlu0 %v270, 45
      %v273 = vpop.permute.xlu0 %272
      %v274 = vrot.slane %v273, 4
      %vm275 = vcmask 367616
      %v276 = vsel %vm275, %v274, %v273
      %vm278 = vcmask 1043432
      %vm279 = vcmask 104452
      %vm280 = vmor %vm279, %vm278
      %281 = vst.msk [vmem:[#allocation2 + $0x4] sm:$0x77] %vm280, %v276
      %v282 = vld [vmem:[%s165 + $0x4] sm:$0x7]
      %284 = vrot.lane.b32.xlu0 %v282, 47
      %v285 = vpop.permute.xlu0 %284
      %vm287 = vcmask 247928
      %288 = vst.msk [vmem:[#allocation2 + $0x8] sm:$0x7] %vm287, %v285
      %v289 = vld [vmem:[%s165 + $0x4] sm:$0x7]
      %291 = vrot.lane.b32.xlu0 %v289, 49
      %v292 = vpop.permute.xlu0 %291
      %vm294 = vcmask 395528
      %295 = vst.msk [vmem:[#allocation2 + $0x8] sm:$0x7] %vm294, %v292
      %v296 = vld [vmem:[#allocation2] ss:$4 sm:$0x7]
      %v297 = vld [vmem:[%s1] sm:$0xff]
      %v298 = vld [vmem:[%s1 + $0x8] sm:$0x7]
      %v300 = vlaneseq
      %v301 = vshrl.u32 %v300, 7
      %v302 = vsub.s32 0, %v301
      %v303 = vrot.slane %v296, %v302
      %v304 = vlaneseq
      %v305 = vshrl.u32 %v304, 7
      %v306 = vsub.s32 1, %v305
      %v307 = vrot.slane %v296, %v306
      %v308 = vlaneseq
      %v309 = vshrl.u32 %v308, 7
      %v310 = vsub.s32 2, %v309
      %v311 = vrot.slane %v296, %v310
      %316 = vset.pattern.permute.xlu0 0
      %317 = vperm.xlu0 %316, %v297
      %v318 = vpop.permute.xlu0 %317
      %321 = vset.pattern.permute.xlu0 0
      %322 = vperm.xlu0 %321, %v298
      %v323 = vpop.permute.xlu0 %322
      %v325 = vmul.f32 %v303, %v318
      %v326 = vmul.f32 %v307, %v318
      %v327 = vmul.f32 %v311, %v318
      %v328 = vmul.f32 %v303, %v323
      %v329 = vmul.f32 %v307, %v323
      %v330 = vmul.f32 %v311, %v323
      %s331 = scalar_lea.vmem [#allocation2], 1
      %v332 = vld [vmem:[%s331] ss:$4 sm:$0x7]
      %s333 = scalar_lea.vmem %s1, 16
      %v334 = vld [vmem:[%s333] sm:$0xff]
      %v335 = vld [vmem:[%s333 + $0x8] sm:$0x7]
      %v337 = vlaneseq
      %v338 = vshrl.u32 %v337, 7
      %v339 = vsub.s32 0, %v338
      %v340 = vrot.slane %v332, %v339
      %v341 = vlaneseq
      %v342 = vshrl.u32 %v341, 7
      %v343 = vsub.s32 1, %v342
      %v344 = vrot.slane %v332, %v343
      %v345 = vlaneseq
      %v346 = vshrl.u32 %v345, 7
      %v347 = vsub.s32 2, %v346
      %v348 = vrot.slane %v332, %v347
      %353 = vset.pattern.permute.xlu0 0
      %354 = vperm.xlu0 %353, %v334
      %v355 = vpop.permute.xlu0 %354
      %358 = vset.pattern.permute.xlu0 0
      %359 = vperm.xlu0 %358, %v335
      %v360 = vpop.permute.xlu0 %359
      %v362 = vmul.f32 %v340, %v355
      %v363 = vmul.f32 %v344, %v355
      %v364 = vmul.f32 %v348, %v355
      %v365 = vmul.f32 %v340, %v360
      %v366 = vmul.f32 %v344, %v360
      %v367 = vmul.f32 %v348, %v360
      %v368 = vadd.f32 %v325, %v362
      %v369 = vadd.f32 %v326, %v363
      %v370 = vadd.f32 %v327, %v364
      %v371 = vadd.f32 %v328, %v365
      %v372 = vadd.f32 %v329, %v366
      %v373 = vadd.f32 %v330, %v367
      %s374 = scalar_lea.vmem [#allocation2], 2
      %v375 = vld [vmem:[%s374] ss:$4 sm:$0x7]
      %s376 = scalar_lea.vmem %s1, 32
      %v377 = vld [vmem:[%s376] sm:$0xff]
      %v378 = vld [vmem:[%s376 + $0x8] sm:$0x7]
      %v380 = vlaneseq
      %v381 = vshrl.u32 %v380, 7
      %v382 = vsub.s32 0, %v381
      %v383 = vrot.slane %v375, %v382
      %v384 = vlaneseq
      %v385 = vshrl.u32 %v384, 7
      %v386 = vsub.s32 1, %v385
      %v387 = vrot.slane %v375, %v386
      %v388 = vlaneseq
      %v389 = vshrl.u32 %v388, 7
      %v390 = vsub.s32 2, %v389
      %v391 = vrot.slane %v375, %v390
      %396 = vset.pattern.permute.xlu0 0
      %397 = vperm.xlu0 %396, %v377
      %v398 = vpop.permute.xlu0 %397
      %401 = vset.pattern.permute.xlu0 0
      %402 = vperm.xlu0 %401, %v378
      %v403 = vpop.permute.xlu0 %402
      %v405 = vmul.f32 %v383, %v398
      %v406 = vmul.f32 %v387, %v398
      %v407 = vmul.f32 %v391, %v398
      %v408 = vmul.f32 %v383, %v403
      %v409 = vmul.f32 %v387, %v403
      %v410 = vmul.f32 %v391, %v403
      %v411 = vadd.f32 %v368, %v405
      %v412 = vadd.f32 %v369, %v406
      %v413 = vadd.f32 %v370, %v407
      %v414 = vadd.f32 %v371, %v408
      %v415 = vadd.f32 %v372, %v409
      %v416 = vadd.f32 %v373, %v410
      %v417 = vld [vmem:[%s2] sm:$0xff]
      %v418 = vld [vmem:[%s2 + $0x8] sm:$0x7]
      %420 = vset.pattern.permute.xlu0 0
      %421 = vperm.xlu0 %420, %v417
      %v422 = vpop.permute.xlu0 %421
      %425 = vset.pattern.permute.xlu0 0
      %426 = vperm.xlu0 %425, %v418
      %v427 = vpop.permute.xlu0 %426
      %v429 = vadd.f32 %v411, %v422
      %v430 = vadd.f32 %v412, %v422
      %v431 = vadd.f32 %v413, %v422
      %v432 = vadd.f32 %v414, %v427
      %v433 = vadd.f32 %v415, %v427
      %v434 = vadd.f32 %v416, %v427
      %435 = vst [vmem:[%s170] sm:$0xff] %v429
      %436 = vst [vmem:[%s170 + $0x8] sm:$0xff] %v430
      %vm437 = vcmask 556032
      %438 = vst.msk [vmem:[%s170 + $0x10] sm:$0xff] %vm437, %v431
      %439 = vst [vmem:[%s170 + $0x18] sm:$0x7] %v432
      %440 = vst [vmem:[%s170 + $0x20] sm:$0x7] %v433
      %441 = vst.msk [vmem:[%s170 + $0x28] sm:$0x7] %vm172, %v434
      %p442 = scmp.lt.s32.totalorder %s14, 1
      %s443 = scalar_select %p442, %s14, 1
      %s444 = smul.addr %s443, 6
      %s445 = smul.addr %s444, 8
      %s446 = scalar_lea.vmem %s3, %s445
      // Predicated region
      $region33: #{tpu_custom_call.1} parent=31 // pred_check
        %p447 = pneg %p100
      $region34: #{tpu_custom_call.1} parent=31 // pred_check_branch
        %449 = sbr.rel (%p447) target = $region36
      $region35: #{tpu_custom_call.1} parent=31 // pred_region
        _
      $region36: #{tpu_custom_call.1} parent=31 // pred_fallthru
        _
    $region32: #{tpu_custom_call.1} parent=5 // pred_fallthru
      _
    %p450 = scmp.le.s32.totalorder 2, %s9
    // Predicated region
    $region37: #{tpu_custom_call.1} parent=5 // pred_check
      %p451 = pneg %p450
    $region38: #{tpu_custom_call.1} parent=5 // pred_check_branch
      %453 = sbr.rel (%p451) target = $region40
    $region39: #{tpu_custom_call.1} parent=5 // pred_region
      %s454 = ssub.s32 %s9, 2
      // Predicated region
      $region41: #{tpu_custom_call.1} parent=39 // pred_check
        %p455 = pneg %p106
      $region42: #{tpu_custom_call.1} parent=39 // pred_check_branch
        %457 = sbr.rel (%p455) target = $region44
      $region43: #{tpu_custom_call.1} parent=39 // pred_region
        %p458 = scmp.lt.s32.totalorder %s15, 1
        %s459 = scalar_select %p458, %s15, 1
        %s460 = smul.addr %s459, 6
        %s461 = smul.addr %s460, 8
        %s462 = scalar_lea.vmem %s3, %s461
      $region44: #{tpu_custom_call.1} parent=39 // pred_fallthru
        _
    $region40: #{tpu_custom_call.1} parent=5 // pred_fallthru
      _
  $region6: #{tpu_custom_call.1} parent=0 // loop_footer
    %s13 = sadd.s32 1, %s9
  $region7: #{tpu_custom_call.1} parent=0 // loop_footer_branch
    %8 = sbr.rel target = $region3
  $region8: #{tpu_custom_call.1} parent=0 // loop_exit
    _

</llo_original>
